<compile_context>
chip_gen: v7x
topology: tpu7x:2x2x1
jax: 0.10.0
libtpu: 0.0.40
codegen_flags: <defaults>
</compile_context>

<pallas_src>
import functools

import jax
import jax.numpy as jnp
from jax.experimental import pallas as pl
from jax.experimental.pallas import tpu as pltpu

NUM_LAYERS = 7          # 6 hidden Linear+ReLU, 1 output Linear
LANE_PAD = 128          # pad every feature dim to the lane width
MAX_BATCH_TILE = 1024   # larger tiles amortize ~0.35 us per-grid-step overhead
MIN_SPLIT_BATCH = 256   # ensure >=2 grid steps (v7x: 2 TCs) once batch is mid-size


def _cdiv(a: int, b: int) -> int:
    return (a + b - 1) // b


def _round_up(x: int, m: int) -> int:
    return ((x + m - 1) // m) * m


# ---------------------------------------------------------------------------
# Parameter packing (done once, outside the forward pass).
# ---------------------------------------------------------------------------
def pack_dqn_params(weights, biases, dtype=jnp.bfloat16, pad=LANE_PAD):
    """Pack per-layer (in_i, out_i) weights / (out_i,) biases into two dense
    zero-padded buffers: w_packed (L, pad, pad), b_packed (L, 1, pad).
    Zero padding is mathematically a no-op for the MLP."""
    n = len(weights)
    w_packed = jnp.zeros((n, pad, pad), dtype)
    b_packed = jnp.zeros((n, 1, pad), dtype)
    for i, (w, b) in enumerate(zip(weights, biases)):
        assert w.shape[0] <= pad and w.shape[1] <= pad, "layer dim exceeds pad"
        w_packed = w_packed.at[i, : w.shape[0], : w.shape[1]].set(w.astype(dtype))
        b_packed = b_packed.at[i, 0, : b.shape[0]].set(b.astype(dtype))
    return w_packed, b_packed


# ---------------------------------------------------------------------------
# Pallas forward pass.
# ---------------------------------------------------------------------------
@functools.partial(jax.jit, static_argnames=("out_size",))
def dqn_forward(x, w_packed, b_packed, out_size):
    """x: (B, input_size) f32.  Returns (q: (B, out_size) f32,
    action: (B,) int32 = argmax_a q) — argmax is done in the wrapper."""
    batch, in_size = x.shape
    n_layers, pad, _ = w_packed.shape

    # bf16 on the wire: halves input DMA bytes, removes one in-kernel cast.
    x = x.astype(jnp.bfloat16)

    # Sublane-align the input feature dim (no-op for in_size=16).
    in_pad = _round_up(in_size, 8)
    if in_pad != in_size:
        x = jnp.pad(x, ((0, 0), (0, in_pad - in_size)))

    # Tile sizing: split the batch evenly into num_tiles tiles of <= 1024 rows;
    # for mid-size batches force >= 2 tiles so both v7x TensorCores get work.
    num_tiles = _cdiv(batch, MAX_BATCH_TILE)
    if batch >= MIN_SPLIT_BATCH:
        num_tiles = max(num_tiles, 2)
    tm = _round_up(_cdiv(batch, num_tiles), 8)
    b_pad = num_tiles * tm
    if b_pad != batch:
        x = jnp.pad(x, ((0, b_pad - batch), (0, 0)))
    grid = (num_tiles,)

    def kernel(x_ref, w_ref, b_ref, q_ref):
        h = x_ref[...]                                   # (tm, in_pad) bf16
        for layer in range(n_layers):
            if layer == 0:
                # Contract only over the real (sublane-aligned) input features.
                w = w_ref[0, :in_pad, :]
            else:
                w = w_ref[layer]
            acc = jnp.dot(h, w, preferred_element_type=jnp.float32)
            acc = acc + b_ref[layer].astype(jnp.float32)
            if layer < n_layers - 1:
                h = jnp.maximum(acc, 0.0).astype(jnp.bfloat16)
            else:
                h = acc                                  # final layer stays f32
        # Lane-dense store of the full 128-wide padded final activation
        # (unmasked vst); the wrapper slices the real out_size columns.
        q_ref[...] = h.astype(q_ref.dtype)

    itemsize_w = w_packed.dtype.itemsize
    cost = pl.CostEstimate(
        flops=2 * b_pad * n_layers * pad * pad,
        transcendentals=0,
        bytes_accessed=(
            w_packed.size * itemsize_w
            + b_packed.size * itemsize_w
            + x.size * x.dtype.itemsize
            + b_pad * pad * 4
        ),
    )

    q_full = pl.pallas_call(
        kernel,
        out_shape=jax.ShapeDtypeStruct((b_pad, pad), jnp.float32),
        grid=grid,
        in_specs=[
            pl.BlockSpec((tm, in_pad), lambda i: (i, 0)),
            pl.BlockSpec((n_layers, pad, pad), lambda i: (0, 0, 0)),
            pl.BlockSpec((n_layers, 1, pad), lambda i: (0, 0, 0)),
        ],
        out_specs=pl.BlockSpec((tm, pad), lambda i: (i, 0)),
        compiler_params=pltpu.CompilerParams(
            dimension_semantics=("parallel",),
        ),
        cost_estimate=cost,
    )(x, w_packed, b_packed)

    q = q_full[:batch, :out_size]
    # Action selection in the wrapper: a (B, out_size) argmax is free at replay
    # buffer batch sizes and removes a lane-sparse int32 output DMA stream.
    action = jnp.argmax(q, axis=-1).astype(jnp.int32)
    return q, action


# ---------------------------------------------------------------------------
# Init + references.
# ---------------------------------------------------------------------------
def init_dqn_params(key, input_size, hidden_size, output_size):
    """Deterministic init mimicking torch.nn.Linear's U(-1/sqrt(fan_in), ...)."""
    dims = [input_size] + [hidden_size] * (NUM_LAYERS - 1) + [output_size]
    weights, biases = [], []
    for i in range(NUM_LAYERS):
        fan_in, fan_out = dims[i], dims[i + 1]
        key, kw, kb = jax.random.split(key, 3)
        bound = 1.0 / jnp.sqrt(jnp.float32(fan_in))
        # Stored in (in, out) layout (i.e. already W.T vs. torch).
        w = jax.random.uniform(kw, (fan_in, fan_out), jnp.float32, -bound, bound)
        b = jax.random.uniform(kb, (fan_out,), jnp.float32, -bound, bound)
        weights.append(w)
        biases.append(b)
    return weights, biases


def dqn_reference(x, weights, biases, compute_dtype=jnp.float32):
    """Pure-JAX reference; compute_dtype=bf16 mirrors the kernel's casting."""
    h = x.astype(compute_dtype)
    for i, (w, b) in enumerate(zip(weights, biases)):
        h = jnp.dot(
            h.astype(compute_dtype),
            w.astype(compute_dtype),
            preferred_element_type=jnp.float32,
        ) + b.astype(compute_dtype).astype(jnp.float32)
        if i < len(weights) - 1:
            h = jnp.maximum(h, 0.0).astype(compute_dtype)
    return h.astype(jnp.float32)


if __name__ == "__main__":
    INPUT_SIZE = 16   # flattened maze observation
    HIDDEN_SIZE = 32
    OUTPUT_SIZE = 4   # 4 maze actions
    BATCH = 8

    key = jax.random.PRNGKey(0)
    key, kx = jax.random.split(key)
    x = jax.random.normal(kx, (BATCH, INPUT_SIZE), jnp.float32)

    weights, biases = init_dqn_params(key, INPUT_SIZE, HIDDEN_SIZE, OUTPUT_SIZE)
    w_packed, b_packed = pack_dqn_params(weights, biases, dtype=jnp.bfloat16)

    q, action = dqn_forward(x, w_packed, b_packed, OUTPUT_SIZE)
    q = jax.block_until_ready(q)
    action = jax.block_until_ready(action)

    assert q.shape == (BATCH, OUTPUT_SIZE)
    assert action.shape == (BATCH,)

    # Reference with matching bf16 compute (same casts/accumulation as kernel).
    ref_bf16 = dqn_reference(x, weights, biases, compute_dtype=jnp.bfloat16)
    assert jnp.allclose(q, ref_bf16, atol=5e-3, rtol=5e-3), (
        f"max abs err vs bf16 ref: {jnp.max(jnp.abs(q - ref_bf16))}"
    )

    # Loose sanity check against the full-f32 reference (bf16 rounding only).
    ref_f32 = dqn_reference(x, weights, biases, compute_dtype=jnp.float32)
    assert jnp.allclose(q, ref_f32, atol=1e-1, rtol=1e-1), (
        f"max abs err vs f32 ref: {jnp.max(jnp.abs(q - ref_f32))}"
    )

    # Action selection must be consistent with the kernel's Q-values.
    assert jnp.array_equal(
        action, jnp.argmax(q, axis=-1).astype(jnp.int32)
    ), "argmax mismatch"

    print("KERNEL_OK")
</pallas_src>

<mosaic_0001>
module attributes {stable_mosaic.version = 11 : i64} {
  func.func @kernel(%arg0: i32, %arg1: memref<8x16xbf16, #tpu.memory_space<vmem>>, %arg2: memref<7x128x128xbf16, #tpu.memory_space<vmem>>, %arg3: memref<7x1x128xbf16, #tpu.memory_space<vmem>>, %arg4: memref<8x128xf32, #tpu.memory_space<vmem>>) attributes {dimension_semantics = [#tpu.dimension_semantics<parallel>], iteration_bounds = array<i64: 1>, scalar_prefetch = 0 : i64, scratch_operands = 0 : i64, tpu.core_type = #tpu.core_type<tc>, window_params = [{transform_indices = @transform_0, window_bounds = array<i64: 8, 16>}, {pipeline_mode = #tpu.pipeline_mode<synchronous>, transform_indices = @transform_1, window_bounds = array<i64: 7, 128, 128>}, {pipeline_mode = #tpu.pipeline_mode<synchronous>, transform_indices = @transform_2, window_bounds = array<i64: 7, 1, 128>}, {transform_indices = @transform_3, window_bounds = array<i64: 8, 128>}]} {
    %c0 = arith.constant 0 : index
    %c0_0 = arith.constant 0 : index
    %0 = vector.load %arg1[%c0, %c0_0] : memref<8x16xbf16, #tpu.memory_space<vmem>>, vector<8x16xbf16>
    %c0_1 = arith.constant 0 : index
    %c0_2 = arith.constant 0 : index
    %c0_3 = arith.constant 0 : index
    %1 = vector.load %arg2[%c0_1, %c0_2, %c0_3] : memref<7x128x128xbf16, #tpu.memory_space<vmem>>, vector<1x16x128xbf16>
    %2 = vector.shape_cast %1 : vector<1x16x128xbf16> to vector<16x128xbf16>
    %cst = arith.constant dense<0.000000e+00> : vector<8x128xf32>
    %3 = tpu.matmul %0, %2, %cst {dimension_numbers = #tpu.dot_dimension_numbers<[1], [0], [0], [1], [0, 0, 1, 1], [], []>} : vector<8x16xbf16>, vector<16x128xbf16>, vector<8x128xf32> -> vector<8x128xf32>
    %c0_4 = arith.constant 0 : index
    %c0_5 = arith.constant 0 : index
    %c0_6 = arith.constant 0 : index
    %4 = vector.load %arg3[%c0_4, %c0_5, %c0_6] : memref<7x1x128xbf16, #tpu.memory_space<vmem>>, vector<1x1x128xbf16>
    %5 = vector.shape_cast %4 : vector<1x1x128xbf16> to vector<1x128xbf16>
    %6 = arith.extf %5 : vector<1x128xbf16> to vector<1x128xf32>
    %7 = vector.broadcast %6 : vector<1x128xf32> to vector<8x128xf32>
    %8 = arith.addf %3, %7 : vector<8x128xf32>
    %cst_7 = arith.constant 0.000000e+00 : f32
    %9 = vector.broadcast %cst_7 : f32 to vector<8x128xf32>
    %10 = arith.maximumf %8, %9 : vector<8x128xf32>
    %11 = arith.truncf %10 : vector<8x128xf32> to vector<8x128xbf16>
    %c1 = arith.constant 1 : index
    %c0_8 = arith.constant 0 : index
    %c0_9 = arith.constant 0 : index
    %12 = vector.load %arg2[%c1, %c0_8, %c0_9] : memref<7x128x128xbf16, #tpu.memory_space<vmem>>, vector<1x128x128xbf16>
    %13 = vector.shape_cast %12 : vector<1x128x128xbf16> to vector<128x128xbf16>
    %cst_10 = arith.constant dense<0.000000e+00> : vector<8x128xf32>
    %14 = tpu.matmul %11, %13, %cst_10 {dimension_numbers = #tpu.dot_dimension_numbers<[1], [0], [0], [1], [0, 0, 1, 1], [], []>} : vector<8x128xbf16>, vector<128x128xbf16>, vector<8x128xf32> -> vector<8x128xf32>
    %c1_11 = arith.constant 1 : index
    %c0_12 = arith.constant 0 : index
    %c0_13 = arith.constant 0 : index
    %15 = vector.load %arg3[%c1_11, %c0_12, %c0_13] : memref<7x1x128xbf16, #tpu.memory_space<vmem>>, vector<1x1x128xbf16>
    %16 = vector.shape_cast %15 : vector<1x1x128xbf16> to vector<1x128xbf16>
    %17 = arith.extf %16 : vector<1x128xbf16> to vector<1x128xf32>
    %18 = vector.broadcast %17 : vector<1x128xf32> to vector<8x128xf32>
    %19 = arith.addf %14, %18 : vector<8x128xf32>
    %cst_14 = arith.constant 0.000000e+00 : f32
    %20 = vector.broadcast %cst_14 : f32 to vector<8x128xf32>
    %21 = arith.maximumf %19, %20 : vector<8x128xf32>
    %22 = arith.truncf %21 : vector<8x128xf32> to vector<8x128xbf16>
    %c2 = arith.constant 2 : index
    %c0_15 = arith.constant 0 : index
    %c0_16 = arith.constant 0 : index
    %23 = vector.load %arg2[%c2, %c0_15, %c0_16] : memref<7x128x128xbf16, #tpu.memory_space<vmem>>, vector<1x128x128xbf16>
    %24 = vector.shape_cast %23 : vector<1x128x128xbf16> to vector<128x128xbf16>
    %cst_17 = arith.constant dense<0.000000e+00> : vector<8x128xf32>
    %25 = tpu.matmul %22, %24, %cst_17 {dimension_numbers = #tpu.dot_dimension_numbers<[1], [0], [0], [1], [0, 0, 1, 1], [], []>} : vector<8x128xbf16>, vector<128x128xbf16>, vector<8x128xf32> -> vector<8x128xf32>
    %c2_18 = arith.constant 2 : index
    %c0_19 = arith.constant 0 : index
    %c0_20 = arith.constant 0 : index
    %26 = vector.load %arg3[%c2_18, %c0_19, %c0_20] : memref<7x1x128xbf16, #tpu.memory_space<vmem>>, vector<1x1x128xbf16>
    %27 = vector.shape_cast %26 : vector<1x1x128xbf16> to vector<1x128xbf16>
    %28 = arith.extf %27 : vector<1x128xbf16> to vector<1x128xf32>
    %29 = vector.broadcast %28 : vector<1x128xf32> to vector<8x128xf32>
    %30 = arith.addf %25, %29 : vector<8x128xf32>
    %cst_21 = arith.constant 0.000000e+00 : f32
    %31 = vector.broadcast %cst_21 : f32 to vector<8x128xf32>
    %32 = arith.maximumf %30, %31 : vector<8x128xf32>
    %33 = arith.truncf %32 : vector<8x128xf32> to vector<8x128xbf16>
    %c3 = arith.constant 3 : index
    %c0_22 = arith.constant 0 : index
    %c0_23 = arith.constant 0 : index
    %34 = vector.load %arg2[%c3, %c0_22, %c0_23] : memref<7x128x128xbf16, #tpu.memory_space<vmem>>, vector<1x128x128xbf16>
    %35 = vector.shape_cast %34 : vector<1x128x128xbf16> to vector<128x128xbf16>
    %cst_24 = arith.constant dense<0.000000e+00> : vector<8x128xf32>
    %36 = tpu.matmul %33, %35, %cst_24 {dimension_numbers = #tpu.dot_dimension_numbers<[1], [0], [0], [1], [0, 0, 1, 1], [], []>} : vector<8x128xbf16>, vector<128x128xbf16>, vector<8x128xf32> -> vector<8x128xf32>
    %c3_25 = arith.constant 3 : index
    %c0_26 = arith.constant 0 : index
    %c0_27 = arith.constant 0 : index
    %37 = vector.load %arg3[%c3_25, %c0_26, %c0_27] : memref<7x1x128xbf16, #tpu.memory_space<vmem>>, vector<1x1x128xbf16>
    %38 = vector.shape_cast %37 : vector<1x1x128xbf16> to vector<1x128xbf16>
    %39 = arith.extf %38 : vector<1x128xbf16> to vector<1x128xf32>
    %40 = vector.broadcast %39 : vector<1x128xf32> to vector<8x128xf32>
    %41 = arith.addf %36, %40 : vector<8x128xf32>
    %cst_28 = arith.constant 0.000000e+00 : f32
    %42 = vector.broadcast %cst_28 : f32 to vector<8x128xf32>
    %43 = arith.maximumf %41, %42 : vector<8x128xf32>
    %44 = arith.truncf %43 : vector<8x128xf32> to vector<8x128xbf16>
    %c4 = arith.constant 4 : index
    %c0_29 = arith.constant 0 : index
    %c0_30 = arith.constant 0 : index
    %45 = vector.load %arg2[%c4, %c0_29, %c0_30] : memref<7x128x128xbf16, #tpu.memory_space<vmem>>, vector<1x128x128xbf16>
    %46 = vector.shape_cast %45 : vector<1x128x128xbf16> to vector<128x128xbf16>
    %cst_31 = arith.constant dense<0.000000e+00> : vector<8x128xf32>
    %47 = tpu.matmul %44, %46, %cst_31 {dimension_numbers = #tpu.dot_dimension_numbers<[1], [0], [0], [1], [0, 0, 1, 1], [], []>} : vector<8x128xbf16>, vector<128x128xbf16>, vector<8x128xf32> -> vector<8x128xf32>
    %c4_32 = arith.constant 4 : index
    %c0_33 = arith.constant 0 : index
    %c0_34 = arith.constant 0 : index
    %48 = vector.load %arg3[%c4_32, %c0_33, %c0_34] : memref<7x1x128xbf16, #tpu.memory_space<vmem>>, vector<1x1x128xbf16>
    %49 = vector.shape_cast %48 : vector<1x1x128xbf16> to vector<1x128xbf16>
    %50 = arith.extf %49 : vector<1x128xbf16> to vector<1x128xf32>
    %51 = vector.broadcast %50 : vector<1x128xf32> to vector<8x128xf32>
    %52 = arith.addf %47, %51 : vector<8x128xf32>
    %cst_35 = arith.constant 0.000000e+00 : f32
    %53 = vector.broadcast %cst_35 : f32 to vector<8x128xf32>
    %54 = arith.maximumf %52, %53 : vector<8x128xf32>
    %55 = arith.truncf %54 : vector<8x128xf32> to vector<8x128xbf16>
    %c5 = arith.constant 5 : index
    %c0_36 = arith.constant 0 : index
    %c0_37 = arith.constant 0 : index
    %56 = vector.load %arg2[%c5, %c0_36, %c0_37] : memref<7x128x128xbf16, #tpu.memory_space<vmem>>, vector<1x128x128xbf16>
    %57 = vector.shape_cast %56 : vector<1x128x128xbf16> to vector<128x128xbf16>
    %cst_38 = arith.constant dense<0.000000e+00> : vector<8x128xf32>
    %58 = tpu.matmul %55, %57, %cst_38 {dimension_numbers = #tpu.dot_dimension_numbers<[1], [0], [0], [1], [0, 0, 1, 1], [], []>} : vector<8x128xbf16>, vector<128x128xbf16>, vector<8x128xf32> -> vector<8x128xf32>
    %c5_39 = arith.constant 5 : index
    %c0_40 = arith.constant 0 : index
    %c0_41 = arith.constant 0 : index
    %59 = vector.load %arg3[%c5_39, %c0_40, %c0_41] : memref<7x1x128xbf16, #tpu.memory_space<vmem>>, vector<1x1x128xbf16>
    %60 = vector.shape_cast %59 : vector<1x1x128xbf16> to vector<1x128xbf16>
    %61 = arith.extf %60 : vector<1x128xbf16> to vector<1x128xf32>
    %62 = vector.broadcast %61 : vector<1x128xf32> to vector<8x128xf32>
    %63 = arith.addf %58, %62 : vector<8x128xf32>
    %cst_42 = arith.constant 0.000000e+00 : f32
    %64 = vector.broadcast %cst_42 : f32 to vector<8x128xf32>
    %65 = arith.maximumf %63, %64 : vector<8x128xf32>
    %66 = arith.truncf %65 : vector<8x128xf32> to vector<8x128xbf16>
    %c6 = arith.constant 6 : index
    %c0_43 = arith.constant 0 : index
    %c0_44 = arith.constant 0 : index
    %67 = vector.load %arg2[%c6, %c0_43, %c0_44] : memref<7x128x128xbf16, #tpu.memory_space<vmem>>, vector<1x128x128xbf16>
    %68 = vector.shape_cast %67 : vector<1x128x128xbf16> to vector<128x128xbf16>
    %cst_45 = arith.constant dense<0.000000e+00> : vector<8x128xf32>
    %69 = tpu.matmul %66, %68, %cst_45 {dimension_numbers = #tpu.dot_dimension_numbers<[1], [0], [0], [1], [0, 0, 1, 1], [], []>} : vector<8x128xbf16>, vector<128x128xbf16>, vector<8x128xf32> -> vector<8x128xf32>
    %c6_46 = arith.constant 6 : index
    %c0_47 = arith.constant 0 : index
    %c0_48 = arith.constant 0 : index
    %70 = vector.load %arg3[%c6_46, %c0_47, %c0_48] : memref<7x1x128xbf16, #tpu.memory_space<vmem>>, vector<1x1x128xbf16>
    %71 = vector.shape_cast %70 : vector<1x1x128xbf16> to vector<1x128xbf16>
    %72 = arith.extf %71 : vector<1x128xbf16> to vector<1x128xf32>
    %73 = vector.broadcast %72 : vector<1x128xf32> to vector<8x128xf32>
    %74 = arith.addf %69, %73 : vector<8x128xf32>
    %c0_49 = arith.constant 0 : index
    %c0_50 = arith.constant 0 : index
    %75 = vector.load %arg4[%c0_49, %c0_50] : memref<8x128xf32, #tpu.memory_space<vmem>>, vector<8x128xf32>
    tpu.vector_store %arg4[%c0_49, %c0_50], %74 {strides = array<i32>} : memref<8x128xf32, #tpu.memory_space<vmem>>, vector<8x128xf32>,
    return
  }
  func.func @transform_0(%arg0: i32) -> (i32, i32) {
    %c0_i32 = arith.constant 0 : i32
    %c0_i32_0 = arith.constant 0 : i32
    return %arg0, %c0_i32 : i32, i32
  }
  func.func @transform_1(%arg0: i32) -> (i32, i32, i32) {
    %c0_i32 = arith.constant 0 : i32
    %c0_i32_0 = arith.constant 0 : i32
    %c0_i32_1 = arith.constant 0 : i32
    %c0_i32_2 = arith.constant 0 : i32
    return %c0_i32, %c0_i32_0, %c0_i32_1 : i32, i32, i32
  }
  func.func @transform_2(%arg0: i32) -> (i32, i32, i32) {
    %c0_i32 = arith.constant 0 : i32
    %c0_i32_0 = arith.constant 0 : i32
    %c0_i32_1 = arith.constant 0 : i32
    %c0_i32_2 = arith.constant 0 : i32
    return %c0_i32, %c0_i32_0, %c0_i32_1 : i32, i32, i32
  }
  func.func @transform_3(%arg0: i32) -> (i32, i32) {
    %c0_i32 = arith.constant 0 : i32
    %c0_i32_0 = arith.constant 0 : i32
    return %arg0, %c0_i32 : i32, i32
  }
}

</mosaic_0001>

<llo_original>
// kernel: dqn_forward.1
$region0: #{dqn_forward.1}
  #allocation0 [shape = 'u32[]', space=smem, size = 0x4, offset = 0x4, fixed_abs, tag = 'smem constant byte address 0x4 - core index']
  #allocation1 [shape = 'u32[144,128]{1,0:T(1,128)}', space=vmem, size = 0x12000, scoped, tag = 'internal scratch']
  %s0 = inlined_call_operand.vmem [shape: bf16[8,16], index: 0, kind: input, shape index: {}]
  %s1 = inlined_call_operand.hbm [shape: bf16[7,128,128], index: 1, kind: input, shape index: {}]
  %s2 = inlined_call_operand.vmem [shape: bf16[7,1,128], index: 2, kind: input, shape index: {}]
  %s3 = inlined_call_operand.vmem [shape: f32[8,128], index: 3, kind: output, shape index: {}]
  %s4 = sld [smem:[#allocation0]]
  $region26: #{dqn_forward.1} parent=0
    _
  %s6 = ssub.s32 1, %s4
  %s7 = scalar_select 0, %s6, %s4
  $region1: #{dqn_forward.1} parent=0
    #allocation2 [shape = 'u8[229376]{0}', space=vmem, size = 0x38000, scoped, tag = 'input window, operand 1, single buffered']
    #allocation3 [shape = 's32[1]{0}', space=sflag, size = 0x4, scoped, tag = 'scoped memory for dqn_forward.1']
    %8 = vsyncpa [#allocation3], 0
    // Predicated region
    $region2: #{dqn_forward.1} parent=1 // pred_check
      _
    $region3: #{dqn_forward.1} parent=1 // pred_check_branch
      %10 = sbr.rel (0) target = $region5
    $region4: #{dqn_forward.1} parent=1 // pred_region
      _
    $region5: #{dqn_forward.1} parent=1 // pred_fallthru
      _
    // Predicated region
    $region6: #{dqn_forward.1} parent=1 // pred_check
      _
    $region7: #{dqn_forward.1} parent=1 // pred_check_branch
      %12 = sbr.rel (0) target = $region9
    $region8: #{dqn_forward.1} parent=1 // pred_region
      %s14 = ssub.s32 7168, 7168
      %15 = vsyncadd [#allocation3], %s14
      %s16 = sshll.u32 [#allocation2], 4
      %s17 = int_to_ptr.vmem [resolvable:$true] %s16
      %22 = dma.hbm_to_vmem [thread:$0]  %s1, 7168, %s17, [#allocation3], 64, 64, 4
    $region9: #{dqn_forward.1} parent=1 // pred_fallthru
      _
    // Predicated region
    $region10: #{dqn_forward.1} parent=1 // pred_check
      _
    $region11: #{dqn_forward.1} parent=1 // pred_check_branch
      %24 = sbr.rel (0) target = $region13
    $region12: #{dqn_forward.1} parent=1 // pred_region
      _
    $region13: #{dqn_forward.1} parent=1 // pred_fallthru
      _
    // Predicated region
    $region14: #{dqn_forward.1} parent=1 // pred_check
      _
    $region15: #{dqn_forward.1} parent=1 // pred_check_branch
      %26 = sbr.rel (0) target = $region17
    $region16: #{dqn_forward.1} parent=1 // pred_region
      %27 = dma.done [#allocation3], 7168
    $region17: #{dqn_forward.1} parent=1 // pred_fallthru
      _
    %v29 = vld [vmem:[%s0] sm:$0xf]
    %v30 = vld [vmem:[#allocation2] sm:$0xf]
    %v31 = vld [vmem:[#allocation2 + $0x4] sm:$0xf]
    %v32 = vld [vmem:[%s2] sm:$0x1]
    %v33 = vunpack.c.l.bf16 %v32
    %v34 = vlaneseq
    %v35 = vshrl.u32 %v34, 7
    %v36 = vsub.s32 0, %v35
    %v37 = vrot.slane %v33, %v36
    %v40 = vunpack.c.l.b16 %v30
    %v41 = vunpack.c.l.b16 %v31
    %v42 = vpack.c.b16 %v41, %v40
    %vm44 = vcmask 130048
    %v46 = vsel %vm44, %v29, 0
    %48 = vmatprep.subr.bf16.mxu0 0
    %49 = vmatpush1.bf16.msra.mxu0 %v42
    %50 = vmatprep.subr.bf16.mxu0 0
    %51 = vmatpush1.bf16.msra.mxu0 0
    %52 = vmatprep.subr.bf16.mxu0 0
    %53 = vmatpush1.bf16.msra.mxu0 0
    %54 = vmatprep.subr.bf16.mxu0 0
    %55 = vmatpush1.bf16.msra.mxu0 0
    %56 = vmatprep.subr.bf16.mxu0 0
    %57 = vmatpush1.bf16.msra.mxu0 0
    %58 = vmatprep.subr.bf16.mxu0 0
    %59 = vmatpush1.bf16.msra.mxu0 0
    %60 = vmatprep.subr.bf16.mxu0 0
    %61 = vmatpush1.bf16.msra.mxu0 0
    %62 = vmatprep.subr.bf16.mxu0 0
    %63 = vmatpush1.bf16.msra.mxu0 0
    %64 = vmatprep.subr.bf16.mxu0 0
    %65 = vmatpush1.bf16.msra.mxu0 0
    %66 = vmatprep.subr.bf16.mxu0 0
    %67 = vmatpush1.bf16.msra.mxu0 0
    %68 = vmatprep.subr.bf16.mxu0 0
    %69 = vmatpush1.bf16.msra.mxu0 0
    %70 = vmatprep.subr.bf16.mxu0 0
    %71 = vmatpush1.bf16.msra.mxu0 0
    %72 = vmatprep.subr.bf16.mxu0 0
    %73 = vmatpush1.bf16.msra.mxu0 0
    %74 = vmatprep.subr.bf16.mxu0 0
    %75 = vmatpush1.bf16.msra.mxu0 0
    %76 = vmatprep.subr.bf16.mxu0 0
    %77 = vmatpush1.bf16.msra.mxu0 0
    %78 = vmatprep.subr.bf16.mxu0 0
    %79 = vmatpush1.bf16.msra.mxu0 0
    %80 = vmatprep.mubr.bf16.mxu0 0
    %81 = vmatmul.mubr.bf16.gmra.mrb[0].mxu0 %v46
    %v82 = vpop.f32.mrb[0].mxu0
    %v83 = vadd.f32 %v37, %v82
    %v84 = vpop.f32.mrb[0].mxu0
    %v85 = vpop.f32.mrb[0].mxu0
    %v86 = vpop.f32.mrb[0].mxu0
    %87 = vdwg.mxu0
    %v88 = vmax.f32 %v83, 0.0
    %v89 = vpack.c.bf16 %v88, %v88
    %s90 = scalar_lea.vmem [#allocation2], 64
    %v91 = vld [vmem:[%s90] sm:$0xf]
    %v92 = vld [vmem:[%s90 + $0x4] sm:$0xf]
    %v93 = vld [vmem:[%s90 + $0x8] sm:$0xf]
    %v94 = vld [vmem:[%s90 + $0xc] sm:$0xf]
    %v95 = vld [vmem:[%s90 + $0x10] sm:$0xf]
    %v96 = vld [vmem:[%s90 + $0x14] sm:$0xf]
    %v97 = vld [vmem:[%s90 + $0x18] sm:$0xf]
    %v98 = vld [vmem:[%s90 + $0x1c] sm:$0xf]
    %v99 = vld [vmem:[%s90 + $0x20] sm:$0xf]
    %v100 = vld [vmem:[%s90 + $0x24] sm:$0xf]
    %v101 = vld [vmem:[%s90 + $0x28] sm:$0xf]
    %v102 = vld [vmem:[%s90 + $0x2c] sm:$0xf]
    %v103 = vld [vmem:[%s90 + $0x30] sm:$0xf]
    %v104 = vld [vmem:[%s90 + $0x34] sm:$0xf]
    %v105 = vld [vmem:[%s90 + $0x38] sm:$0xf]
    %v106 = vld [vmem:[%s90 + $0x3c] sm:$0xf]
    %s107 = scalar_lea.vmem %s2, 1
    %v108 = vld [vmem:[%s107] sm:$0x1]
    %v109 = vunpack.c.l.bf16 %v108
    %v110 = vlaneseq
    %v111 = vshrl.u32 %v110, 7
    %v112 = vsub.s32 0, %v111
    %v113 = vrot.slane %v109, %v112
    %v130 = vunpack.c.l.b16 %v91
    %v131 = vunpack.c.l.b16 %v92
    %v132 = vunpack.c.l.b16 %v93
    %v133 = vunpack.c.l.b16 %v94
    %v134 = vunpack.c.l.b16 %v95
    %v135 = vunpack.c.l.b16 %v96
    %v136 = vunpack.c.l.b16 %v97
    %v137 = vunpack.c.l.b16 %v98
    %v138 = vunpack.c.l.b16 %v99
    %v139 = vunpack.c.l.b16 %v100
    %v140 = vunpack.c.l.b16 %v101
    %v141 = vunpack.c.l.b16 %v102
    %v142 = vunpack.c.l.b16 %v103
    %v143 = vunpack.c.l.b16 %v104
    %v144 = vunpack.c.l.b16 %v105
    %v145 = vunpack.c.l.b16 %v106
    %v146 = vpack.c.b16 %v131, %v130
    %v147 = vpack.c.b16 %v133, %v132
    %v148 = vpack.c.b16 %v135, %v134
    %v149 = vpack.c.b16 %v137, %v136
    %v150 = vpack.c.b16 %v139, %v138
    %v151 = vpack.c.b16 %v141, %v140
    %v152 = vpack.c.b16 %v143, %v142
    %v153 = vpack.c.b16 %v145, %v144
    %162 = vmatprep.subr.bf16.mxu0 0
    %163 = vmatpush1.bf16.msra.mxu0 %v146
    %164 = vmatprep.subr.bf16.mxu0 0
    %165 = vmatpush1.bf16.msra.mxu0 %v147
    %166 = vmatprep.subr.bf16.mxu0 0
    %167 = vmatpush1.bf16.msra.mxu0 %v148
    %168 = vmatprep.subr.bf16.mxu0 0
    %169 = vmatpush1.bf16.msra.mxu0 %v149
    %170 = vmatprep.subr.bf16.mxu0 0
    %171 = vmatpush1.bf16.msra.mxu0 %v150
    %172 = vmatprep.subr.bf16.mxu0 0
    %173 = vmatpush1.bf16.msra.mxu0 %v151
    %174 = vmatprep.subr.bf16.mxu0 0
    %175 = vmatpush1.bf16.msra.mxu0 %v152
    %176 = vmatprep.subr.bf16.mxu0 0
    %177 = vmatpush1.bf16.msra.mxu0 %v153
    %178 = vmatprep.subr.bf16.mxu0 0
    %179 = vmatpush1.bf16.msra.mxu0 0
    %180 = vmatprep.subr.bf16.mxu0 0
    %181 = vmatpush1.bf16.msra.mxu0 0
    %182 = vmatprep.subr.bf16.mxu0 0
    %183 = vmatpush1.bf16.msra.mxu0 0
    %184 = vmatprep.subr.bf16.mxu0 0
    %185 = vmatpush1.bf16.msra.mxu0 0
    %186 = vmatprep.subr.bf16.mxu0 0
    %187 = vmatpush1.bf16.msra.mxu0 0
    %188 = vmatprep.subr.bf16.mxu0 0
    %189 = vmatpush1.bf16.msra.mxu0 0
    %190 = vmatprep.subr.bf16.mxu0 0
    %191 = vmatpush1.bf16.msra.mxu0 0
    %192 = vmatprep.subr.bf16.mxu0 0
    %193 = vmatpush1.bf16.msra.mxu0 0
    %194 = vmatprep.mubr.bf16.mxu0 0
    %195 = vmatmul.mubr.bf16.gmra.mrb[0].mxu0 %v89
    %v196 = vpop.f32.mrb[0].mxu0
    %v197 = vadd.f32 %v113, %v196
    %v198 = vpop.f32.mrb[0].mxu0
    %v199 = vpop.f32.mrb[0].mxu0
    %v200 = vpop.f32.mrb[0].mxu0
    %201 = vdwg.mxu0
    %v202 = vmax.f32 %v197, 0.0
    %v203 = vpack.c.bf16 %v202, %v202
    %s204 = scalar_lea.vmem [#allocation2], 128
    %v205 = vld [vmem:[%s204] sm:$0xf]
    %v206 = vld [vmem:[%s204 + $0x4] sm:$0xf]
    %v207 = vld [vmem:[%s204 + $0x8] sm:$0xf]
    %v208 = vld [vmem:[%s204 + $0xc] sm:$0xf]
    %v209 = vld [vmem:[%s204 + $0x10] sm:$0xf]
    %v210 = vld [vmem:[%s204 + $0x14] sm:$0xf]
    %v211 = vld [vmem:[%s204 + $0x18] sm:$0xf]
    %v212 = vld [vmem:[%s204 + $0x1c] sm:$0xf]
    %v213 = vld [vmem:[%s204 + $0x20] sm:$0xf]
    %v214 = vld [vmem:[%s204 + $0x24] sm:$0xf]
    %v215 = vld [vmem:[%s204 + $0x28] sm:$0xf]
    %v216 = vld [vmem:[%s204 + $0x2c] sm:$0xf]
    %v217 = vld [vmem:[%s204 + $0x30] sm:$0xf]
    %v218 = vld [vmem:[%s204 + $0x34] sm:$0xf]
    %v219 = vld [vmem:[%s204 + $0x38] sm:$0xf]
    %v220 = vld [vmem:[%s204 + $0x3c] sm:$0xf]
    %s221 = scalar_lea.vmem %s2, 2
    %v222 = vld [vmem:[%s221] sm:$0x1]
    %v223 = vunpack.c.l.bf16 %v222
    %v224 = vlaneseq
    %v225 = vshrl.u32 %v224, 7
    %v226 = vsub.s32 0, %v225
    %v227 = vrot.slane %v223, %v226
    %v244 = vunpack.c.l.b16 %v205
    %v245 = vunpack.c.l.b16 %v206
    %v246 = vunpack.c.l.b16 %v207
    %v247 = vunpack.c.l.b16 %v208
    %v248 = vunpack.c.l.b16 %v209
    %v249 = vunpack.c.l.b16 %v210
    %v250 = vunpack.c.l.b16 %v211
    %v251 = vunpack.c.l.b16 %v212
    %v252 = vunpack.c.l.b16 %v213
    %v253 = vunpack.c.l.b16 %v214
    %v254 = vunpack.c.l.b16 %v215
    %v255 = vunpack.c.l.b16 %v216
    %v256 = vunpack.c.l.b16 %v217
    %v257 = vunpack.c.l.b16 %v218
    %v258 = vunpack.c.l.b16 %v219
    %v259 = vunpack.c.l.b16 %v220
    %v260 = vpack.c.b16 %v245, %v244
    %v261 = vpack.c.b16 %v247, %v246
    %v262 = vpack.c.b16 %v249, %v248
    %v263 = vpack.c.b16 %v251, %v250
    %v264 = vpack.c.b16 %v253, %v252
    %v265 = vpack.c.b16 %v255, %v254
    %v266 = vpack.c.b16 %v257, %v256
    %v267 = vpack.c.b16 %v259, %v258
    %276 = vmatprep.subr.bf16.mxu0 0
    %277 = vmatpush1.bf16.msra.mxu0 %v260
    %278 = vmatprep.subr.bf16.mxu0 0
    %279 = vmatpush1.bf16.msra.mxu0 %v261
    %280 = vmatprep.subr.bf16.mxu0 0
    %281 = vmatpush1.bf16.msra.mxu0 %v262
    %282 = vmatprep.subr.bf16.mxu0 0
    %283 = vmatpush1.bf16.msra.mxu0 %v263
    %284 = vmatprep.subr.bf16.mxu0 0
    %285 = vmatpush1.bf16.msra.mxu0 %v264
    %286 = vmatprep.subr.bf16.mxu0 0
    %287 = vmatpush1.bf16.msra.mxu0 %v265
    %288 = vmatprep.subr.bf16.mxu0 0
    %289 = vmatpush1.bf16.msra.mxu0 %v266
    %290 = vmatprep.subr.bf16.mxu0 0
    %291 = vmatpush1.bf16.msra.mxu0 %v267
    %292 = vmatprep.subr.bf16.mxu0 0
    %293 = vmatpush1.bf16.msra.mxu0 0
    %294 = vmatprep.subr.bf16.mxu0 0
    %295 = vmatpush1.bf16.msra.mxu0 0
    %296 = vmatprep.subr.bf16.mxu0 0
    %297 = vmatpush1.bf16.msra.mxu0 0
    %298 = vmatprep.subr.bf16.mxu0 0
    %299 = vmatpush1.bf16.msra.mxu0 0
    %300 = vmatprep.subr.bf16.mxu0 0
    %301 = vmatpush1.bf16.msra.mxu0 0
    %302 = vmatprep.subr.bf16.mxu0 0
    %303 = vmatpush1.bf16.msra.mxu0 0
    %304 = vmatprep.subr.bf16.mxu0 0
    %305 = vmatpush1.bf16.msra.mxu0 0
    %306 = vmatprep.subr.bf16.mxu0 0
    %307 = vmatpush1.bf16.msra.mxu0 0
    %308 = vmatprep.mubr.bf16.mxu0 0
    %309 = vmatmul.mubr.bf16.gmra.mrb[0].mxu0 %v203
    %v310 = vpop.f32.mrb[0].mxu0
    %v311 = vadd.f32 %v227, %v310
    %v312 = vpop.f32.mrb[0].mxu0
    %v313 = vpop.f32.mrb[0].mxu0
    %v314 = vpop.f32.mrb[0].mxu0
    %315 = vdwg.mxu0
    %v316 = vmax.f32 %v311, 0.0
    %v317 = vpack.c.bf16 %v316, %v316
    %s318 = scalar_lea.vmem [#allocation2], 192
    %v319 = vld [vmem:[%s318] sm:$0xf]
    %v320 = vld [vmem:[%s318 + $0x4] sm:$0xf]
    %v321 = vld [vmem:[%s318 + $0x8] sm:$0xf]
    %v322 = vld [vmem:[%s318 + $0xc] sm:$0xf]
    %v323 = vld [vmem:[%s318 + $0x10] sm:$0xf]
    %v324 = vld [vmem:[%s318 + $0x14] sm:$0xf]
    %v325 = vld [vmem:[%s318 + $0x18] sm:$0xf]
    %v326 = vld [vmem:[%s318 + $0x1c] sm:$0xf]
    %v327 = vld [vmem:[%s318 + $0x20] sm:$0xf]
    %v328 = vld [vmem:[%s318 + $0x24] sm:$0xf]
    %v329 = vld [vmem:[%s318 + $0x28] sm:$0xf]
    %v330 = vld [vmem:[%s318 + $0x2c] sm:$0xf]
    %v331 = vld [vmem:[%s318 + $0x30] sm:$0xf]
    %v332 = vld [vmem:[%s318 + $0x34] sm:$0xf]
    %v333 = vld [vmem:[%s318 + $0x38] sm:$0xf]
    %v334 = vld [vmem:[%s318 + $0x3c] sm:$0xf]
    %s335 = scalar_lea.vmem %s2, 3
    %v336 = vld [vmem:[%s335] sm:$0x1]
    %v337 = vunpack.c.l.bf16 %v336
    %v338 = vlaneseq
    %v339 = vshrl.u32 %v338, 7
    %v340 = vsub.s32 0, %v339
    %v341 = vrot.slane %v337, %v340
    %v358 = vunpack.c.l.b16 %v319
    %v359 = vunpack.c.l.b16 %v320
    %v360 = vunpack.c.l.b16 %v321
    %v361 = vunpack.c.l.b16 %v322
    %v362 = vunpack.c.l.b16 %v323
    %v363 = vunpack.c.l.b16 %v324
    %v364 = vunpack.c.l.b16 %v325
    %v365 = vunpack.c.l.b16 %v326
    %v366 = vunpack.c.l.b16 %v327
    %v367 = vunpack.c.l.b16 %v328
    %v368 = vunpack.c.l.b16 %v329
    %v369 = vunpack.c.l.b16 %v330
    %v370 = vunpack.c.l.b16 %v331
    %v371 = vunpack.c.l.b16 %v332
    %v372 = vunpack.c.l.b16 %v333
    %v373 = vunpack.c.l.b16 %v334
    %v374 = vpack.c.b16 %v359, %v358
    %v375 = vpack.c.b16 %v361, %v360
    %v376 = vpack.c.b16 %v363, %v362
    %v377 = vpack.c.b16 %v365, %v364
    %v378 = vpack.c.b16 %v367, %v366
    %v379 = vpack.c.b16 %v369, %v368
    %v380 = vpack.c.b16 %v371, %v370
    %v381 = vpack.c.b16 %v373, %v372
    %390 = vmatprep.subr.bf16.mxu0 0
    %391 = vmatpush1.bf16.msra.mxu0 %v374
    %392 = vmatprep.subr.bf16.mxu0 0
    %393 = vmatpush1.bf16.msra.mxu0 %v375
    %394 = vmatprep.subr.bf16.mxu0 0
    %395 = vmatpush1.bf16.msra.mxu0 %v376
    %396 = vmatprep.subr.bf16.mxu0 0
    %397 = vmatpush1.bf16.msra.mxu0 %v377
    %398 = vmatprep.subr.bf16.mxu0 0
    %399 = vmatpush1.bf16.msra.mxu0 %v378
    %400 = vmatprep.subr.bf16.mxu0 0
    %401 = vmatpush1.bf16.msra.mxu0 %v379
    %402 = vmatprep.subr.bf16.mxu0 0
    %403 = vmatpush1.bf16.msra.mxu0 %v380
    %404 = vmatprep.subr.bf16.mxu0 0
    %405 = vmatpush1.bf16.msra.mxu0 %v381
    %406 = vmatprep.subr.bf16.mxu0 0
    %407 = vmatpush1.bf16.msra.mxu0 0
    %408 = vmatprep.subr.bf16.mxu0 0
    %409 = vmatpush1.bf16.msra.mxu0 0
    %410 = vmatprep.subr.bf16.mxu0 0
    %411 = vmatpush1.bf16.msra.mxu0 0
    %412 = vmatprep.subr.bf16.mxu0 0
    %413 = vmatpush1.bf16.msra.mxu0 0
    %414 = vmatprep.subr.bf16.mxu0 0
    %415 = vmatpush1.bf16.msra.mxu0 0
    %416 = vmatprep.subr.bf16.mxu0 0
    %417 = vmatpush1.bf16.msra.mxu0 0
    %418 = vmatprep.subr.bf16.mxu0 0
    %419 = vmatpush1.bf16.msra.mxu0 0
    %420 = vmatprep.subr.bf16.mxu0 0
    %421 = vmatpush1.bf16.msra.mxu0 0
    %422 = vmatprep.mubr.bf16.mxu0 0
    %423 = vmatmul.mubr.bf16.gmra.mrb[0].mxu0 %v317
    %v424 = vpop.f32.mrb[0].mxu0
    %v425 = vadd.f32 %v341, %v424
    %v426 = vpop.f32.mrb[0].mxu0
    %v427 = vpop.f32.mrb[0].mxu0
    %v428 = vpop.f32.mrb[0].mxu0
    %429 = vdwg.mxu0
    %v430 = vmax.f32 %v425, 0.0
    %v431 = vpack.c.bf16 %v430, %v430
    %s432 = scalar_lea.vmem [#allocation2], 256
    %v433 = vld [vmem:[%s432] sm:$0xf]
    %v434 = vld [vmem:[%s432 + $0x4] sm:$0xf]
    %v435 = vld [vmem:[%s432 + $0x8] sm:$0xf]
    %v436 = vld [vmem:[%s432 + $0xc] sm:$0xf]
    %v437 = vld [vmem:[%s432 + $0x10] sm:$0xf]
    %v438 = vld [vmem:[%s432 + $0x14] sm:$0xf]
    %v439 = vld [vmem:[%s432 + $0x18] sm:$0xf]
    %v440 = vld [vmem:[%s432 + $0x1c] sm:$0xf]
    %v441 = vld [vmem:[%s432 + $0x20] sm:$0xf]
    %v442 = vld [vmem:[%s432 + $0x24] sm:$0xf]
    %v443 = vld [vmem:[%s432 + $0x28] sm:$0xf]
    %v444 = vld [vmem:[%s432 + $0x2c] sm:$0xf]
    %v445 = vld [vmem:[%s432 + $0x30] sm:$0xf]
    %v446 = vld [vmem:[%s432 + $0x34] sm:$0xf]
    %v447 = vld [vmem:[%s432 + $0x38] sm:$0xf]
    %v448 = vld [vmem:[%s432 + $0x3c] sm:$0xf]
    %s449 = scalar_lea.vmem %s2, 4
    %v450 = vld [vmem:[%s449] sm:$0x1]
    %v451 = vunpack.c.l.bf16 %v450
    %v452 = vlaneseq
    %v453 = vshrl.u32 %v452, 7
    %v454 = vsub.s32 0, %v453
    %v455 = vrot.slane %v451, %v454
    %v472 = vunpack.c.l.b16 %v433
    %v473 = vunpack.c.l.b16 %v434
    %v474 = vunpack.c.l.b16 %v435
    %v475 = vunpack.c.l.b16 %v436
    %v476 = vunpack.c.l.b16 %v437
    %v477 = vunpack.c.l.b16 %v438
    %v478 = vunpack.c.l.b16 %v439
    %v479 = vunpack.c.l.b16 %v440
    %v480 = vunpack.c.l.b16 %v441
    %v481 = vunpack.c.l.b16 %v442
    %v482 = vunpack.c.l.b16 %v443
    %v483 = vunpack.c.l.b16 %v444
    %v484 = vunpack.c.l.b16 %v445
    %v485 = vunpack.c.l.b16 %v446
    %v486 = vunpack.c.l.b16 %v447
    %v487 = vunpack.c.l.b16 %v448
    %v488 = vpack.c.b16 %v473, %v472
    %v489 = vpack.c.b16 %v475, %v474
    %v490 = vpack.c.b16 %v477, %v476
    %v491 = vpack.c.b16 %v479, %v478
    %v492 = vpack.c.b16 %v481, %v480
    %v493 = vpack.c.b16 %v483, %v482
    %v494 = vpack.c.b16 %v485, %v484
    %v495 = vpack.c.b16 %v487, %v486
    %504 = vmatprep.subr.bf16.mxu0 0
    %505 = vmatpush1.bf16.msra.mxu0 %v488
    %506 = vmatprep.subr.bf16.mxu0 0
    %507 = vmatpush1.bf16.msra.mxu0 %v489
    %508 = vmatprep.subr.bf16.mxu0 0
    %509 = vmatpush1.bf16.msra.mxu0 %v490
    %510 = vmatprep.subr.bf16.mxu0 0
    %511 = vmatpush1.bf16.msra.mxu0 %v491
    %512 = vmatprep.subr.bf16.mxu0 0
    %513 = vmatpush1.bf16.msra.mxu0 %v492
    %514 = vmatprep.subr.bf16.mxu0 0
    %515 = vmatpush1.bf16.msra.mxu0 %v493
    %516 = vmatprep.subr.bf16.mxu0 0
    %517 = vmatpush1.bf16.msra.mxu0 %v494
    %518 = vmatprep.subr.bf16.mxu0 0
    %519 = vmatpush1.bf16.msra.mxu0 %v495
    %520 = vmatprep.subr.bf16.mxu0 0
    %521 = vmatpush1.bf16.msra.mxu0 0
    %522 = vmatprep.subr.bf16.mxu0 0
    %523 = vmatpush1.bf16.msra.mxu0 0
    %524 = vmatprep.subr.bf16.mxu0 0
    %525 = vmatpush1.bf16.msra.mxu0 0
    %526 = vmatprep.subr.bf16.mxu0 0
    %527 = vmatpush1.bf16.msra.mxu0 0
    %528 = vmatprep.subr.bf16.mxu0 0
    %529 = vmatpush1.bf16.msra.mxu0 0
    %530 = vmatprep.subr.bf16.mxu0 0
    %531 = vmatpush1.bf16.msra.mxu0 0
    %532 = vmatprep.subr.bf16.mxu0 0
    %533 = vmatpush1.bf16.msra.mxu0 0
    %534 = vmatprep.subr.bf16.mxu0 0
    %535 = vmatpush1.bf16.msra.mxu0 0
    %536 = vmatprep.mubr.bf16.mxu0 0
    %537 = vmatmul.mubr.bf16.gmra.mrb[0].mxu0 %v431
    %v538 = vpop.f32.mrb[0].mxu0
    %v539 = vadd.f32 %v455, %v538
    %v540 = vpop.f32.mrb[0].mxu0
    %v541 = vpop.f32.mrb[0].mxu0
    %v542 = vpop.f32.mrb[0].mxu0
    %543 = vdwg.mxu0
    %v544 = vmax.f32 %v539, 0.0
    %v545 = vpack.c.bf16 %v544, %v544
    %s546 = scalar_lea.vmem [#allocation2], 320
    %v547 = vld [vmem:[%s546] sm:$0xf]
    %v548 = vld [vmem:[%s546 + $0x4] sm:$0xf]
    %v549 = vld [vmem:[%s546 + $0x8] sm:$0xf]
    %v550 = vld [vmem:[%s546 + $0xc] sm:$0xf]
    %v551 = vld [vmem:[%s546 + $0x10] sm:$0xf]
    %v552 = vld [vmem:[%s546 + $0x14] sm:$0xf]
    %v553 = vld [vmem:[%s546 + $0x18] sm:$0xf]
    %v554 = vld [vmem:[%s546 + $0x1c] sm:$0xf]
    %v555 = vld [vmem:[%s546 + $0x20] sm:$0xf]
    %v556 = vld [vmem:[%s546 + $0x24] sm:$0xf]
    %v557 = vld [vmem:[%s546 + $0x28] sm:$0xf]
    %v558 = vld [vmem:[%s546 + $0x2c] sm:$0xf]
    %v559 = vld [vmem:[%s546 + $0x30] sm:$0xf]
    %v560 = vld [vmem:[%s546 + $0x34] sm:$0xf]
    %v561 = vld [vmem:[%s546 + $0x38] sm:$0xf]
    %v562 = vld [vmem:[%s546 + $0x3c] sm:$0xf]
    %s563 = scalar_lea.vmem %s2, 5
    %v564 = vld [vmem:[%s563] sm:$0x1]
    %v565 = vunpack.c.l.bf16 %v564
    %v566 = vlaneseq
    %v567 = vshrl.u32 %v566, 7
    %v568 = vsub.s32 0, %v567
    %v569 = vrot.slane %v565, %v568
    %v586 = vunpack.c.l.b16 %v547
    %v587 = vunpack.c.l.b16 %v548
    %v588 = vunpack.c.l.b16 %v549
    %v589 = vunpack.c.l.b16 %v550
    %v590 = vunpack.c.l.b16 %v551
    %v591 = vunpack.c.l.b16 %v552
    %v592 = vunpack.c.l.b16 %v553
    %v593 = vunpack.c.l.b16 %v554
    %v594 = vunpack.c.l.b16 %v555
    %v595 = vunpack.c.l.b16 %v556
    %v596 = vunpack.c.l.b16 %v557
    %v597 = vunpack.c.l.b16 %v558
    %v598 = vunpack.c.l.b16 %v559
    %v599 = vunpack.c.l.b16 %v560
    %v600 = vunpack.c.l.b16 %v561
    %v601 = vunpack.c.l.b16 %v562
    %v602 = vpack.c.b16 %v587, %v586
    %v603 = vpack.c.b16 %v589, %v588
    %v604 = vpack.c.b16 %v591, %v590
    %v605 = vpack.c.b16 %v593, %v592
    %v606 = vpack.c.b16 %v595, %v594
    %v607 = vpack.c.b16 %v597, %v596
    %v608 = vpack.c.b16 %v599, %v598
    %v609 = vpack.c.b16 %v601, %v600
    %618 = vmatprep.subr.bf16.mxu0 0
    %619 = vmatpush1.bf16.msra.mxu0 %v602
    %620 = vmatprep.subr.bf16.mxu0 0
    %621 = vmatpush1.bf16.msra.mxu0 %v603
    %622 = vmatprep.subr.bf16.mxu0 0
    %623 = vmatpush1.bf16.msra.mxu0 %v604
    %624 = vmatprep.subr.bf16.mxu0 0
    %625 = vmatpush1.bf16.msra.mxu0 %v605
    %626 = vmatprep.subr.bf16.mxu0 0
    %627 = vmatpush1.bf16.msra.mxu0 %v606
    %628 = vmatprep.subr.bf16.mxu0 0
    %629 = vmatpush1.bf16.msra.mxu0 %v607
    %630 = vmatprep.subr.bf16.mxu0 0
    %631 = vmatpush1.bf16.msra.mxu0 %v608
    %632 = vmatprep.subr.bf16.mxu0 0
    %633 = vmatpush1.bf16.msra.mxu0 %v609
    %634 = vmatprep.subr.bf16.mxu0 0
    %635 = vmatpush1.bf16.msra.mxu0 0
    %636 = vmatprep.subr.bf16.mxu0 0
    %637 = vmatpush1.bf16.msra.mxu0 0
    %638 = vmatprep.subr.bf16.mxu0 0
    %639 = vmatpush1.bf16.msra.mxu0 0
    %640 = vmatprep.subr.bf16.mxu0 0
    %641 = vmatpush1.bf16.msra.mxu0 0
    %642 = vmatprep.subr.bf16.mxu0 0
    %643 = vmatpush1.bf16.msra.mxu0 0
    %644 = vmatprep.subr.bf16.mxu0 0
    %645 = vmatpush1.bf16.msra.mxu0 0
    %646 = vmatprep.subr.bf16.mxu0 0
    %647 = vmatpush1.bf16.msra.mxu0 0
    %648 = vmatprep.subr.bf16.mxu0 0
    %649 = vmatpush1.bf16.msra.mxu0 0
    %650 = vmatprep.mubr.bf16.mxu0 0
    %651 = vmatmul.mubr.bf16.gmra.mrb[0].mxu0 %v545
    %v652 = vpop.f32.mrb[0].mxu0
    %v653 = vadd.f32 %v569, %v652
    %v654 = vpop.f32.mrb[0].mxu0
    %v655 = vpop.f32.mrb[0].mxu0
    %v656 = vpop.f32.mrb[0].mxu0
    %657 = vdwg.mxu0
    %v658 = vmax.f32 %v653, 0.0
    %v659 = vpack.c.bf16 %v658, %v658
    %s660 = scalar_lea.vmem [#allocation2], 384
    %v661 = vld [vmem:[%s660] sm:$0xf]
    %v662 = vld [vmem:[%s660 + $0x4] sm:$0xf]
    %v663 = vld [vmem:[%s660 + $0x8] sm:$0xf]
    %v664 = vld [vmem:[%s660 + $0xc] sm:$0xf]
    %v665 = vld [vmem:[%s660 + $0x10] sm:$0xf]
    %v666 = vld [vmem:[%s660 + $0x14] sm:$0xf]
    %v667 = vld [vmem:[%s660 + $0x18] sm:$0xf]
    %v668 = vld [vmem:[%s660 + $0x1c] sm:$0xf]
    %v669 = vld [vmem:[%s660 + $0x20] sm:$0xf]
    %v670 = vld [vmem:[%s660 + $0x24] sm:$0xf]
    %v671 = vld [vmem:[%s660 + $0x28] sm:$0xf]
    %v672 = vld [vmem:[%s660 + $0x2c] sm:$0xf]
    %v673 = vld [vmem:[%s660 + $0x30] sm:$0xf]
    %v674 = vld [vmem:[%s660 + $0x34] sm:$0xf]
    %v675 = vld [vmem:[%s660 + $0x38] sm:$0xf]
    %v676 = vld [vmem:[%s660 + $0x3c] sm:$0xf]
    %s677 = scalar_lea.vmem %s2, 6
    %v678 = vld [vmem:[%s677] sm:$0x1]
    %v679 = vunpack.c.l.bf16 %v678
    %v680 = vlaneseq
    %v681 = vshrl.u32 %v680, 7
    %v682 = vsub.s32 0, %v681
    %v683 = vrot.slane %v679, %v682
    %v700 = vunpack.c.l.b16 %v661
    %v701 = vunpack.c.l.b16 %v662
    %v702 = vunpack.c.l.b16 %v663
    %v703 = vunpack.c.l.b16 %v664
    %v704 = vunpack.c.l.b16 %v665
    %v705 = vunpack.c.l.b16 %v666
    %v706 = vunpack.c.l.b16 %v667
    %v707 = vunpack.c.l.b16 %v668
    %v708 = vunpack.c.l.b16 %v669
    %v709 = vunpack.c.l.b16 %v670
    %v710 = vunpack.c.l.b16 %v671
    %v711 = vunpack.c.l.b16 %v672
    %v712 = vunpack.c.l.b16 %v673
    %v713 = vunpack.c.l.b16 %v674
    %v714 = vunpack.c.l.b16 %v675
    %v715 = vunpack.c.l.b16 %v676
    %v716 = vpack.c.b16 %v701, %v700
    %v717 = vpack.c.b16 %v703, %v702
    %v718 = vpack.c.b16 %v705, %v704
    %v719 = vpack.c.b16 %v707, %v706
    %v720 = vpack.c.b16 %v709, %v708
    %v721 = vpack.c.b16 %v711, %v710
    %v722 = vpack.c.b16 %v713, %v712
    %v723 = vpack.c.b16 %v715, %v714
    %732 = vmatprep.subr.bf16.mxu0 0
    %733 = vmatpush1.bf16.msra.mxu0 %v716
    %734 = vmatprep.subr.bf16.mxu0 0
    %735 = vmatpush1.bf16.msra.mxu0 %v717
    %736 = vmatprep.subr.bf16.mxu0 0
    %737 = vmatpush1.bf16.msra.mxu0 %v718
    %738 = vmatprep.subr.bf16.mxu0 0
    %739 = vmatpush1.bf16.msra.mxu0 %v719
    %740 = vmatprep.subr.bf16.mxu0 0
    %741 = vmatpush1.bf16.msra.mxu0 %v720
    %742 = vmatprep.subr.bf16.mxu0 0
    %743 = vmatpush1.bf16.msra.mxu0 %v721
    %744 = vmatprep.subr.bf16.mxu0 0
    %745 = vmatpush1.bf16.msra.mxu0 %v722
    %746 = vmatprep.subr.bf16.mxu0 0
    %747 = vmatpush1.bf16.msra.mxu0 %v723
    %748 = vmatprep.subr.bf16.mxu0 0
    %749 = vmatpush1.bf16.msra.mxu0 0
    %750 = vmatprep.subr.bf16.mxu0 0
    %751 = vmatpush1.bf16.msra.mxu0 0
    %752 = vmatprep.subr.bf16.mxu0 0
    %753 = vmatpush1.bf16.msra.mxu0 0
    %754 = vmatprep.subr.bf16.mxu0 0
    %755 = vmatpush1.bf16.msra.mxu0 0
    %756 = vmatprep.subr.bf16.mxu0 0
    %757 = vmatpush1.bf16.msra.mxu0 0
    %758 = vmatprep.subr.bf16.mxu0 0
    %759 = vmatpush1.bf16.msra.mxu0 0
    %760 = vmatprep.subr.bf16.mxu0 0
    %761 = vmatpush1.bf16.msra.mxu0 0
    %762 = vmatprep.subr.bf16.mxu0 0
    %763 = vmatpush1.bf16.msra.mxu0 0
    %764 = vmatprep.mubr.bf16.mxu0 0
    %765 = vmatmul.mubr.bf16.gmra.mrb[0].mxu0 %v659
    %v766 = vpop.f32.mrb[0].mxu0
    %v767 = vadd.f32 %v683, %v766
    %v768 = vpop.f32.mrb[0].mxu0
    %v769 = vpop.f32.mrb[0].mxu0
    %v770 = vpop.f32.mrb[0].mxu0
    %771 = vdwg.mxu0
    %772 = vst [vmem:[%s3] sm:$0xff] %v767
    // Predicated region
    $region18: #{dqn_forward.1} parent=1 // pred_check
      _
    $region19: #{dqn_forward.1} parent=1 // pred_check_branch
      %774 = sbr.rel (0) target = $region21
    $region20: #{dqn_forward.1} parent=1 // pred_region
      _
    $region21: #{dqn_forward.1} parent=1 // pred_fallthru
      _
    // Predicated region
    $region22: #{dqn_forward.1} parent=1 // pred_check
      _
    $region23: #{dqn_forward.1} parent=1 // pred_check_branch
      %776 = sbr.rel (0) target = $region25
    $region24: #{dqn_forward.1} parent=1 // pred_region
      _
    $region25: #{dqn_forward.1} parent=1 // pred_fallthru
      _
    %777 = vsyncpa [#allocation3], 1

</llo_original>
